<compile_context>
chip_gen: v6e
topology: v6e:2x2x1
jax: 0.10.0
libtpu: 0.0.40
codegen_flags: <defaults>
</compile_context>

<pallas_src>
import jax
import jax.numpy as jnp
from jax import lax
from jax.experimental import pallas as pl
from jax.experimental.pallas import tpu as pltpu


def _round_up(a, b):
    return ((a + b - 1) // b) * b


def _make_kernel(n_chunks, chunk_rows, mx_dtype):
    """Kernel for one (row_tile, E) block of x, processed in row sub-chunks."""

    def kernel(x_ref, diag_ref, w1_ref, b1_ref, w2_ref, b2_ref, o_ref):
        # Load the tiny parameters once per grid step (hoisted out of the
        # unrolled chunk loop so every chunk reuses the same values).
        diag = diag_ref[...]                       # (1, E)   f32
        w1 = w1_ref[...]                           # (E, Hp)  mx_dtype
        b1 = b1_ref[...]                           # (1, Hp)  f32
        w2 = w2_ref[...]                           # (Hp, E)  mx_dtype
        b2 = b2_ref[...]                           # (1, E)   f32

        def chunk(c, carry):
            off = pl.multiple_of(c * chunk_rows, chunk_rows)
            xs = x_ref[pl.ds(off, chunk_rows), :].astype(jnp.float32)    # (cs, E)

            # x1 = diag * x        (row-vector broadcast over sublanes)
            x1 = diag * xs

            # MLP on |x|:  E -> Hp -> E ; MXU in mx_dtype, f32 accumulation.
            a = jnp.abs(xs).astype(mx_dtype)
            h = jnp.dot(a, w1, preferred_element_type=jnp.float32) + b1  # (cs, Hp)
            h = jnp.maximum(h, 0.0)
            z = jnp.dot(h.astype(mx_dtype), w2,
                        preferred_element_type=jnp.float32) + b2         # (cs, E)

            # Numerically stable, exact sigmoid: sigmoid(z) = 0.5*(1+tanh(z/2)).
            x2 = 0.5 * (1.0 + jnp.tanh(0.5 * z))

            # Gate + residual, store back into the same row window.
            o_ref[pl.ds(off, chunk_rows), :] = (x1 * x2 + xs).astype(o_ref.dtype)
            return carry

        if n_chunks == 1:
            chunk(0, None)
        else:
            lax.fori_loop(0, n_chunks, chunk, None, unroll=True)

    return kernel


def sign_eq_gate_layer(x, diag, w1, b1, w2, b2, *, row_tile=16384, chunk_rows=1024,
                       min_steps=8, use_bf16_matmul=True):
    """SignEqGateLayer forward.

    x:    (N, E) rows, consumed in its native layout (no transposes)
    diag: (1, E) or (E,)
    w1:   (E, H)  [in, out]    b1: (H,) or (1, H)
    w2:   (H, E)  [in, out]    b2: (E,) or (1, E)
    Returns (N, E) in x.dtype.
    """
    N, E = x.shape
    H = w1.shape[1]
    mx_dtype = jnp.bfloat16 if use_bf16_matmul else jnp.float32

    # ---- row-tile selection: big tiles (~1 MiB of x per grid step) while
    #      aiming for >= min_steps grid steps so v7x's two TensorCores each get
    #      a few pipelined iterations.  Tiles stay multiples of 8 (sublane) and
    #      of the inner chunk size.
    tm = min(row_tile, _round_up(pl.cdiv(N, min_steps), 8))
    tm = max(tm, 8)
    cs = max(8, min(_round_up(chunk_rows, 8), tm))
    tm = _round_up(tm, cs)
    n_chunks = tm // cs

    # Pad N to a tile multiple only when needed (costs one extra pass over the
    # ragged array; large-N callers should keep N a multiple of the row tile).
    Npad = _round_up(N, tm)
    x_in = x if Npad == N else jnp.pad(x, ((0, Npad - N), (0, 0)))

    # ---- tiny parameter prep (a few KiB, host-side) ----
    Hp = _round_up(H, 128)   # free in this orientation (H lives on lanes)
    f32 = jnp.float32
    w1p = jnp.pad(jnp.asarray(w1, f32), ((0, 0), (0, Hp - H))).astype(mx_dtype)  # (E, Hp)
    b1p = jnp.pad(jnp.asarray(b1, f32).reshape(1, H), ((0, 0), (0, Hp - H)))     # (1, Hp)
    w2p = jnp.pad(jnp.asarray(w2, f32), ((0, Hp - H), (0, 0))).astype(mx_dtype)  # (Hp, E)
    b2r = jnp.asarray(b2, f32).reshape(1, E)                                     # (1, E)
    diag_r = jnp.asarray(diag, f32).reshape(1, E)                                # (1, E)

    grid = (Npad // tm,)
    const = lambda shape: pl.BlockSpec(shape, lambda i: (0, 0))

    out = pl.pallas_call(
        _make_kernel(n_chunks, cs, mx_dtype),
        out_shape=jax.ShapeDtypeStruct((Npad, E), x.dtype),
        grid_spec=pltpu.PrefetchScalarGridSpec(
            num_scalar_prefetch=0,
            grid=grid,
            in_specs=[
                pl.BlockSpec((tm, E), lambda i: (i, 0)),   # x row tile (native layout)
                const((1, E)),      # diag
                const((E, Hp)),     # W1 (zero-padded hidden cols)
                const((1, Hp)),     # b1 (zero-padded)
                const((Hp, E)),     # W2 (zero-padded hidden rows)
                const((1, E)),      # b2
            ],
            out_specs=pl.BlockSpec((tm, E), lambda i: (i, 0)),
        ),
        compiler_params=pltpu.CompilerParams(
            dimension_semantics=("parallel",),
            vmem_limit_bytes=32 * 1024 * 1024,
        ),
    )(x_in, diag_r, w1p, b1p, w2p, b2r)

    return out if Npad == N else out[:N]


# ---------------------------- references -------------------------------------
def reference_f32(x, diag, w1, b1, w2, b2):
    x = x.astype(jnp.float32)
    x1 = jnp.asarray(diag, jnp.float32).reshape(1, -1) * x
    h = jnp.maximum(jnp.abs(x) @ w1 + jnp.asarray(b1, jnp.float32).reshape(1, -1), 0.0)
    x2 = jax.nn.sigmoid(h @ w2 + jnp.asarray(b2, jnp.float32).reshape(1, -1))
    return x1 * x2 + x


def reference_bf16_matched(x, diag, w1, b1, w2, b2):
    # Mirrors the kernel's bf16 MXU operands (f32 accumulation, exact sigmoid).
    x = x.astype(jnp.float32)
    x1 = jnp.asarray(diag, jnp.float32).reshape(1, -1) * x
    a = jnp.abs(x).astype(jnp.bfloat16)
    h = jnp.dot(a, jnp.asarray(w1, jnp.float32).astype(jnp.bfloat16),
                preferred_element_type=jnp.float32) + jnp.asarray(b1, jnp.float32).reshape(1, -1)
    h = jnp.maximum(h, 0.0)
    z = jnp.dot(h.astype(jnp.bfloat16), jnp.asarray(w2, jnp.float32).astype(jnp.bfloat16),
                preferred_element_type=jnp.float32) + jnp.asarray(b2, jnp.float32).reshape(1, -1)
    return x1 * jax.nn.sigmoid(z) + x


if __name__ == "__main__":
    num_eigs = 16      # E
    hidden = 92        # BasicMLP hidden_dim (hard-coded 92 in the module)
    N = 1000           # rows; deliberately ragged to exercise the tile-pad path

    key = jax.random.PRNGKey(0)
    kx, kd, k1, kb1, k2, kb2 = jax.random.split(key, 6)

    x = jax.random.normal(kx, (N, num_eigs), dtype=jnp.float32)

    # Parameters (diag init is ones in the module; perturbed here so the gate is
    # non-trivial and the broadcast multiply is actually tested).
    diag = 1.0 + 0.1 * jax.random.normal(kd, (1, num_eigs), dtype=jnp.float32)
    bnd1 = 1.0 / jnp.sqrt(num_eigs)
    w1 = jax.random.uniform(k1, (num_eigs, hidden), jnp.float32, -bnd1, bnd1)
    b1 = jax.random.uniform(kb1, (1, hidden), jnp.float32, -bnd1, bnd1)
    bnd2 = 1.0 / jnp.sqrt(hidden)
    w2 = jax.random.uniform(k2, (hidden, num_eigs), jnp.float32, -bnd2, bnd2)
    b2 = jax.random.uniform(kb2, (1, num_eigs), jnp.float32, -bnd2, bnd2)

    # 1) Default tiling heuristic (8-step grid at this small N, single chunk).
    out = sign_eq_gate_layer(x, diag, w1, b1, w2, b2)
    out = jax.block_until_ready(out)
    assert out.shape == (N, num_eigs)

    # 2) Small explicit tiles: multi-step grid AND multi-chunk inner loop.
    out_small = sign_eq_gate_layer(x, diag, w1, b1, w2, b2,
                                   row_tile=256, chunk_rows=64, min_steps=2)
    out_small = jax.block_until_ready(out_small)
    assert out_small.shape == (N, num_eigs)

    ref_bf = reference_bf16_matched(x, diag, w1, b1, w2, b2)
    ref_32 = reference_f32(x, diag, w1, b1, w2, b2)

    for o in (out, out_small):
        # Tight vs a reference matching the kernel's bf16 MXU operands; loose
        # vs pure-f32 module semantics (bf16 matmul rounding only).
        assert jnp.allclose(o, ref_bf, atol=2e-3, rtol=2e-3), "mismatch vs bf16-matched reference"
        assert jnp.allclose(o, ref_32, atol=3e-2, rtol=3e-2), "mismatch vs f32 reference"

    print("KERNEL_OK")
</pallas_src>

<mosaic_0001>
module attributes {stable_mosaic.version = 11 : i64} {
  func.func @kernel(%arg0: i32, %arg1: memref<128x16xf32, #tpu.memory_space<vmem>>, %arg2: memref<1x16xf32, #tpu.memory_space<vmem>>, %arg3: memref<16x128xbf16, #tpu.memory_space<vmem>>, %arg4: memref<1x128xf32, #tpu.memory_space<vmem>>, %arg5: memref<128x16xbf16, #tpu.memory_space<vmem>>, %arg6: memref<1x16xf32, #tpu.memory_space<vmem>>, %arg7: memref<128x16xf32, #tpu.memory_space<vmem>>) attributes {dimension_semantics = [#tpu.dimension_semantics<parallel>], iteration_bounds = array<i64: 8>, scalar_prefetch = 0 : i64, scratch_operands = 0 : i64, tpu.core_type = #tpu.core_type<tc>, window_params = [{transform_indices = @transform_0, window_bounds = array<i64: 128, 16>}, {pipeline_mode = #tpu.pipeline_mode<synchronous>, transform_indices = @transform_1, window_bounds = array<i64: 1, 16>}, {pipeline_mode = #tpu.pipeline_mode<synchronous>, transform_indices = @transform_2, window_bounds = array<i64: 16, 128>}, {pipeline_mode = #tpu.pipeline_mode<synchronous>, transform_indices = @transform_3, window_bounds = array<i64: 1, 128>}, {pipeline_mode = #tpu.pipeline_mode<synchronous>, transform_indices = @transform_4, window_bounds = array<i64: 128, 16>}, {pipeline_mode = #tpu.pipeline_mode<synchronous>, transform_indices = @transform_5, window_bounds = array<i64: 1, 16>}, {transform_indices = @transform_6, window_bounds = array<i64: 128, 16>}]} {
    %c0 = arith.constant 0 : index
    %c0_0 = arith.constant 0 : index
    %0 = vector.load %arg2[%c0, %c0_0] : memref<1x16xf32, #tpu.memory_space<vmem>>, vector<1x16xf32>
    %c0_1 = arith.constant 0 : index
    %c0_2 = arith.constant 0 : index
    %1 = vector.load %arg3[%c0_1, %c0_2] : memref<16x128xbf16, #tpu.memory_space<vmem>>, vector<16x128xbf16>
    %c0_3 = arith.constant 0 : index
    %c0_4 = arith.constant 0 : index
    %2 = vector.load %arg4[%c0_3, %c0_4] : memref<1x128xf32, #tpu.memory_space<vmem>>, vector<1x128xf32>
    %c0_5 = arith.constant 0 : index
    %c0_6 = arith.constant 0 : index
    %3 = vector.load %arg5[%c0_5, %c0_6] : memref<128x16xbf16, #tpu.memory_space<vmem>>, vector<128x16xbf16>
    %c0_7 = arith.constant 0 : index
    %c0_8 = arith.constant 0 : index
    %4 = vector.load %arg6[%c0_7, %c0_8] : memref<1x16xf32, #tpu.memory_space<vmem>>, vector<1x16xf32>
    %c0_i32 = arith.constant 0 : i32
    %5 = tpu.assume_multiple %c0_i32, 128 : i32
    %6 = arith.index_cast %5 : i32 to index
    %c0_9 = arith.constant 0 : index
    %7 = vector.load %arg1[%6, %c0_9] : memref<128x16xf32, #tpu.memory_space<vmem>>, vector<128x16xf32>
    %8 = vector.broadcast %0 : vector<1x16xf32> to vector<128x16xf32>
    %9 = arith.mulf %8, %7 : vector<128x16xf32>
    %10 = math.absf %7 : vector<128x16xf32>
    %11 = arith.truncf %10 : vector<128x16xf32> to vector<128x16xbf16>
    %cst = arith.constant dense<0.000000e+00> : vector<128x128xf32>
    %12 = tpu.matmul %11, %1, %cst {dimension_numbers = #tpu.dot_dimension_numbers<[1], [0], [0], [1], [0, 0, 1, 1], [], []>} : vector<128x16xbf16>, vector<16x128xbf16>, vector<128x128xf32> -> vector<128x128xf32>
    %13 = vector.broadcast %2 : vector<1x128xf32> to vector<128x128xf32>
    %14 = arith.addf %12, %13 : vector<128x128xf32>
    %cst_10 = arith.constant 0.000000e+00 : f32
    %15 = vector.broadcast %cst_10 : f32 to vector<128x128xf32>
    %16 = arith.maximumf %14, %15 : vector<128x128xf32>
    %17 = arith.truncf %16 : vector<128x128xf32> to vector<128x128xbf16>
    %cst_11 = arith.constant dense<0.000000e+00> : vector<128x16xf32>
    %18 = tpu.matmul %17, %3, %cst_11 {dimension_numbers = #tpu.dot_dimension_numbers<[1], [0], [0], [1], [0, 0, 1, 1], [], []>} : vector<128x128xbf16>, vector<128x16xbf16>, vector<128x16xf32> -> vector<128x16xf32>
    %19 = vector.broadcast %4 : vector<1x16xf32> to vector<128x16xf32>
    %20 = arith.addf %18, %19 : vector<128x16xf32>
    %cst_12 = arith.constant 5.000000e-01 : f32
    %21 = vector.broadcast %cst_12 : f32 to vector<128x16xf32>
    %22 = arith.mulf %21, %20 : vector<128x16xf32>
    %23 = math.tanh %22 : vector<128x16xf32>
    %cst_13 = arith.constant 1.000000e+00 : f32
    %24 = vector.broadcast %cst_13 : f32 to vector<128x16xf32>
    %25 = arith.addf %24, %23 : vector<128x16xf32>
    %cst_14 = arith.constant 5.000000e-01 : f32
    %26 = vector.broadcast %cst_14 : f32 to vector<128x16xf32>
    %27 = arith.mulf %26, %25 : vector<128x16xf32>
    %28 = arith.mulf %9, %27 : vector<128x16xf32>
    %29 = arith.addf %28, %7 : vector<128x16xf32>
    %30 = arith.index_cast %5 : i32 to index
    %c0_15 = arith.constant 0 : index
    %31 = vector.load %arg7[%30, %c0_15] : memref<128x16xf32, #tpu.memory_space<vmem>>, vector<128x16xf32>
    tpu.vector_store %arg7[%30, %c0_15], %29 {strides = array<i32>} : memref<128x16xf32, #tpu.memory_space<vmem>>, vector<128x16xf32>,
    return
  }
  func.func @transform_0(%arg0: i32) -> (i32, i32) {
    %c0_i32 = arith.constant 0 : i32
    %c0_i32_0 = arith.constant 0 : i32
    return %arg0, %c0_i32 : i32, i32
  }
  func.func @transform_1(%arg0: i32) -> (i32, i32) {
    %c0_i32 = arith.constant 0 : i32
    %c0_i32_0 = arith.constant 0 : i32
    %c0_i32_1 = arith.constant 0 : i32
    return %c0_i32, %c0_i32_0 : i32, i32
  }
  func.func @transform_2(%arg0: i32) -> (i32, i32) {
    %c0_i32 = arith.constant 0 : i32
    %c0_i32_0 = arith.constant 0 : i32
    %c0_i32_1 = arith.constant 0 : i32
    return %c0_i32, %c0_i32_0 : i32, i32
  }
  func.func @transform_3(%arg0: i32) -> (i32, i32) {
    %c0_i32 = arith.constant 0 : i32
    %c0_i32_0 = arith.constant 0 : i32
    %c0_i32_1 = arith.constant 0 : i32
    return %c0_i32, %c0_i32_0 : i32, i32
  }
  func.func @transform_4(%arg0: i32) -> (i32, i32) {
    %c0_i32 = arith.constant 0 : i32
    %c0_i32_0 = arith.constant 0 : i32
    %c0_i32_1 = arith.constant 0 : i32
    return %c0_i32, %c0_i32_0 : i32, i32
  }
  func.func @transform_5(%arg0: i32) -> (i32, i32) {
    %c0_i32 = arith.constant 0 : i32
    %c0_i32_0 = arith.constant 0 : i32
    %c0_i32_1 = arith.constant 0 : i32
    return %c0_i32, %c0_i32_0 : i32, i32
  }
  func.func @transform_6(%arg0: i32) -> (i32, i32) {
    %c0_i32 = arith.constant 0 : i32
    %c0_i32_0 = arith.constant 0 : i32
    return %arg0, %c0_i32 : i32, i32
  }
}

</mosaic_0001>

<llo_original>
// kernel: tpu_custom_call.1
$region0: #{tpu_custom_call.1}
  #allocation0 [shape = 'u32[]', space=smem, size = 0x4, offset = 0x4, fixed_abs, tag = 'smem constant byte address 0x4 - core index']
  #allocation1 [shape = 'u32[144,128]{1,0:T(1,128)}', space=vmem, size = 0x12000, scoped, tag = 'internal scratch']
  %s0 = inlined_call_operand.vmem [shape: f32[1024,16], index: 0, kind: input, shape index: {}]
  %s1 = inlined_call_operand.vmem [shape: f32[1,16], index: 1, kind: input, shape index: {}]
  %s2 = inlined_call_operand.vmem [shape: bf16[16,128], index: 2, kind: input, shape index: {}]
  %s3 = inlined_call_operand.vmem [shape: f32[1,128], index: 3, kind: input, shape index: {}]
  %s4 = inlined_call_operand.vmem [shape: bf16[128,16], index: 4, kind: input, shape index: {}]
  %s5 = inlined_call_operand.vmem [shape: f32[1,16], index: 5, kind: input, shape index: {}]
  %s6 = inlined_call_operand.vmem [shape: f32[1024,16], index: 6, kind: output, shape index: {}]
  %s7 = sld [smem:[#allocation0]]
  $region57: #{tpu_custom_call.1} parent=0
    _
  %s9 = ssub.s32 1, %s7
  %s10 = scalar_select 0, %s9, %s7
  loop: start=0, step=1, limit=10
  $region2: #{tpu_custom_call.1} parent=0 // loop_pre_header
    _
  $region3: #{tpu_custom_call.1} parent=0 // loop_header
    %s12 = sphi 0, %s16
    %p13 = scmp.ge.s32.totalorder %s12, 10
    %s22 = sphi 0, %s24
    %s25 = sphi 0, %s22
    %s26 = sphi 0, %s25
    %s42 = sphi 0, %s26
    %s46 = sphi 0, %s46
    %s48 = sphi 0, %s46
    %s49 = sphi 0, %s48
    %s63 = sphi 0, %s49
    %s67 = sphi 0, %s67
    %s69 = sphi 0, %s67
    %s70 = sphi 0, %s69
    %s84 = sphi 0, %s70
    %s88 = sphi 0, %s88
    %s90 = sphi 0, %s88
    %s91 = sphi 0, %s90
    %s105 = sphi 0, %s91
    %s109 = sphi 0, %s109
    %s111 = sphi 0, %s109
    %s112 = sphi 0, %s111
    %s126 = sphi 0, %s112
    %s130 = sphi 0, %s130
    %s132 = sphi 0, %s130
    %s133 = sphi 0, %s132
    %s147 = sphi 0, %s133
    %s153 = sphi 0, %s155
    %s156 = sphi 0, %s153
    %s157 = sphi 0, %s156
    %s173 = sphi 0, %s157
  $region4: #{tpu_custom_call.1} parent=0 // loop_header_branch
    %15 = sbr.rel (%p13) target = $region8
  $region5: #{tpu_custom_call.1} parent=0 // loop_body
    %s17 = ssub.s32 %s12, 1
    %s18 = ssub.s32 %s12, 2
    %s19 = sadd.s32 %s12, 1
    %s20 = ssub.s32 %s12, %s19
    %p21 = scmp.eq.s32.totalorder %s20, 0
    %s23 = sadd.s32 %s22, 1
    %s24 = scalar_select %p21, %s22, %s23
    %p27 = pneg %p21
    %p28 = scmp.eq.s32.totalorder %s12, 7
    %p29 = por %p27, %p28
    %p30 = scmp.ne.s32.totalorder %s22, %s25
    %p31 = scmp.eq.s32.totalorder %s12, 0
    %p32 = por %p30, %p31
    %p33 = scmp.ne.s32.totalorder %s22, %s25
    %p34 = scmp.eq.s32.totalorder %s17, 7
    %p35 = por %p33, %p34
    %p36 = scmp.ne.s32.totalorder %s25, %s26
    %p37 = scmp.eq.s32.totalorder %s17, 0
    %p38 = por %p36, %p37
    %p39 = scmp.ne.s32.totalorder %s25, %s26
    %p40 = scmp.eq.s32.totalorder %s18, 7
    %p41 = por %p39, %p40
    %p43 = scmp.ne.s32.totalorder %s26, %s42
    %p44 = scmp.eq.s32.totalorder %s18, 0
    %p45 = por %p43, %p44
    %s47 = sadd.s32 %s46, 1
    %p50 = scmp.eq.s32.totalorder %s12, 7
    %p51 = scmp.ne.s32.totalorder %s46, %s48
    %p52 = scmp.eq.s32.totalorder %s12, 0
    %p53 = por %p51, %p52
    %p54 = scmp.ne.s32.totalorder %s46, %s48
    %p55 = scmp.eq.s32.totalorder %s17, 7
    %p56 = por %p54, %p55
    %p57 = scmp.ne.s32.totalorder %s48, %s49
    %p58 = scmp.eq.s32.totalorder %s17, 0
    %p59 = por %p57, %p58
    %p60 = scmp.ne.s32.totalorder %s48, %s49
    %p61 = scmp.eq.s32.totalorder %s18, 7
    %p62 = por %p60, %p61
    %p64 = scmp.ne.s32.totalorder %s49, %s63
    %p65 = scmp.eq.s32.totalorder %s18, 0
    %p66 = por %p64, %p65
    %s68 = sadd.s32 %s67, 1
    %p71 = scmp.eq.s32.totalorder %s12, 7
    %p72 = scmp.ne.s32.totalorder %s67, %s69
    %p73 = scmp.eq.s32.totalorder %s12, 0
    %p74 = por %p72, %p73
    %p75 = scmp.ne.s32.totalorder %s67, %s69
    %p76 = scmp.eq.s32.totalorder %s17, 7
    %p77 = por %p75, %p76
    %p78 = scmp.ne.s32.totalorder %s69, %s70
    %p79 = scmp.eq.s32.totalorder %s17, 0
    %p80 = por %p78, %p79
    %p81 = scmp.ne.s32.totalorder %s69, %s70
    %p82 = scmp.eq.s32.totalorder %s18, 7
    %p83 = por %p81, %p82
    %p85 = scmp.ne.s32.totalorder %s70, %s84
    %p86 = scmp.eq.s32.totalorder %s18, 0
    %p87 = por %p85, %p86
    %s89 = sadd.s32 %s88, 1
    %p92 = scmp.eq.s32.totalorder %s12, 7
    %p93 = scmp.ne.s32.totalorder %s88, %s90
    %p94 = scmp.eq.s32.totalorder %s12, 0
    %p95 = por %p93, %p94
    %p96 = scmp.ne.s32.totalorder %s88, %s90
    %p97 = scmp.eq.s32.totalorder %s17, 7
    %p98 = por %p96, %p97
    %p99 = scmp.ne.s32.totalorder %s90, %s91
    %p100 = scmp.eq.s32.totalorder %s17, 0
    %p101 = por %p99, %p100
    %p102 = scmp.ne.s32.totalorder %s90, %s91
    %p103 = scmp.eq.s32.totalorder %s18, 7
    %p104 = por %p102, %p103
    %p106 = scmp.ne.s32.totalorder %s91, %s105
    %p107 = scmp.eq.s32.totalorder %s18, 0
    %p108 = por %p106, %p107
    %s110 = sadd.s32 %s109, 1
    %p113 = scmp.eq.s32.totalorder %s12, 7
    %p114 = scmp.ne.s32.totalorder %s109, %s111
    %p115 = scmp.eq.s32.totalorder %s12, 0
    %p116 = por %p114, %p115
    %p117 = scmp.ne.s32.totalorder %s109, %s111
    %p118 = scmp.eq.s32.totalorder %s17, 7
    %p119 = por %p117, %p118
    %p120 = scmp.ne.s32.totalorder %s111, %s112
    %p121 = scmp.eq.s32.totalorder %s17, 0
    %p122 = por %p120, %p121
    %p123 = scmp.ne.s32.totalorder %s111, %s112
    %p124 = scmp.eq.s32.totalorder %s18, 7
    %p125 = por %p123, %p124
    %p127 = scmp.ne.s32.totalorder %s112, %s126
    %p128 = scmp.eq.s32.totalorder %s18, 0
    %p129 = por %p127, %p128
    %s131 = sadd.s32 %s130, 1
    %p134 = scmp.eq.s32.totalorder %s12, 7
    %p135 = scmp.ne.s32.totalorder %s130, %s132
    %p136 = scmp.eq.s32.totalorder %s12, 0
    %p137 = por %p135, %p136
    %p138 = scmp.ne.s32.totalorder %s130, %s132
    %p139 = scmp.eq.s32.totalorder %s17, 7
    %p140 = por %p138, %p139
    %p141 = scmp.ne.s32.totalorder %s132, %s133
    %p142 = scmp.eq.s32.totalorder %s17, 0
    %p143 = por %p141, %p142
    %p144 = scmp.ne.s32.totalorder %s132, %s133
    %p145 = scmp.eq.s32.totalorder %s18, 7
    %p146 = por %p144, %p145
    %p148 = scmp.ne.s32.totalorder %s133, %s147
    %p149 = scmp.eq.s32.totalorder %s18, 0
    %p150 = por %p148, %p149
    %s151 = ssub.s32 %s12, %s19
    %p152 = scmp.eq.s32.totalorder %s151, 0
    %s154 = sadd.s32 %s153, 1
    %s155 = scalar_select %p152, %s153, %s154
    %p158 = pneg %p152
    %p159 = scmp.eq.s32.totalorder %s12, 7
    %p160 = por %p158, %p159
    %p161 = scmp.ne.s32.totalorder %s153, %s156
    %p162 = scmp.eq.s32.totalorder %s12, 0
    %p163 = por %p161, %p162
    %p164 = scmp.ne.s32.totalorder %s153, %s156
    %p165 = scmp.eq.s32.totalorder %s17, 7
    %p166 = por %p164, %p165
    %p167 = scmp.ne.s32.totalorder %s156, %s157
    %p168 = scmp.eq.s32.totalorder %s17, 0
    %p169 = por %p167, %p168
    %p170 = scmp.ne.s32.totalorder %s156, %s157
    %p171 = scmp.eq.s32.totalorder %s18, 7
    %p172 = por %p170, %p171
    %p174 = scmp.ne.s32.totalorder %s157, %s173
    %p175 = scmp.eq.s32.totalorder %s18, 0
    %p176 = por %p174, %p175
    %p177 = scmp.le.s32.totalorder 1, %s12
    %p178 = scmp.lt.s32.totalorder %s12, 9
    %p179 = pnand %p177, %p178
    %p180 = pneg %p179
    // Predicated region
    $region9: #{tpu_custom_call.1} parent=5 // pred_check
      _
    $region10: #{tpu_custom_call.1} parent=5 // pred_check_branch
      %182 = sbr.rel (%p179) target = $region12
    $region11: #{tpu_custom_call.1} parent=5 // pred_region
      %s183 = ssub.s32 %s12, 1
      // Predicated region
      $region13: #{tpu_custom_call.1} parent=11 // pred_check
        %p184 = pneg %p59
      $region14: #{tpu_custom_call.1} parent=11 // pred_check_branch
        %186 = sbr.rel (%p184) target = $region16
      $region15: #{tpu_custom_call.1} parent=11 // pred_region
        _
      $region16: #{tpu_custom_call.1} parent=11 // pred_fallthru
        _
      // Predicated region
      $region17: #{tpu_custom_call.1} parent=11 // pred_check
        %p187 = pneg %p80
      $region18: #{tpu_custom_call.1} parent=11 // pred_check_branch
        %189 = sbr.rel (%p187) target = $region20
      $region19: #{tpu_custom_call.1} parent=11 // pred_region
        _
      $region20: #{tpu_custom_call.1} parent=11 // pred_fallthru
        _
      // Predicated region
      $region21: #{tpu_custom_call.1} parent=11 // pred_check
        %p190 = pneg %p101
      $region22: #{tpu_custom_call.1} parent=11 // pred_check_branch
        %192 = sbr.rel (%p190) target = $region24
      $region23: #{tpu_custom_call.1} parent=11 // pred_region
        _
      $region24: #{tpu_custom_call.1} parent=11 // pred_fallthru
        _
      // Predicated region
      $region25: #{tpu_custom_call.1} parent=11 // pred_check
        %p193 = pneg %p122
      $region26: #{tpu_custom_call.1} parent=11 // pred_check_branch
        %195 = sbr.rel (%p193) target = $region28
      $region27: #{tpu_custom_call.1} parent=11 // pred_region
        _
      $region28: #{tpu_custom_call.1} parent=11 // pred_fallthru
        _
      // Predicated region
      $region29: #{tpu_custom_call.1} parent=11 // pred_check
        %p196 = pneg %p143
      $region30: #{tpu_custom_call.1} parent=11 // pred_check_branch
        %198 = sbr.rel (%p196) target = $region32
      $region31: #{tpu_custom_call.1} parent=11 // pred_region
        _
      $region32: #{tpu_custom_call.1} parent=11 // pred_fallthru
        _
    $region12: #{tpu_custom_call.1} parent=5 // pred_fallthru
      _
    %p199 = scmp.lt.s32.totalorder %s12, 8
    // Predicated region
    $region33: #{tpu_custom_call.1} parent=5 // pred_check
      %p200 = pneg %p199
    $region34: #{tpu_custom_call.1} parent=5 // pred_check_branch
      %202 = sbr.rel (%p200) target = $region36
    $region35: #{tpu_custom_call.1} parent=5 // pred_region
      // Predicated region
      $region37: #{tpu_custom_call.1} parent=35 // pred_check
        %p203 = pneg %p32
      $region38: #{tpu_custom_call.1} parent=35 // pred_check_branch
        %205 = sbr.rel (%p203) target = $region40
      $region39: #{tpu_custom_call.1} parent=35 // pred_region
        %s206 = smul.u32 16, %s12
        %p207 = scmp.lt.s32.totalorder %s206, 127
        %s208 = scalar_select %p207, %s206, 127
        %s209 = smul.addr %s208, 8
        %s210 = scalar_lea.vmem %s0, %s209
        %s211 = smul.u32 16, %s12
      $region40: #{tpu_custom_call.1} parent=35 // pred_fallthru
        _
    $region36: #{tpu_custom_call.1} parent=5 // pred_fallthru
      _
    %p212 = scmp.le.s32.totalorder 1, %s12
    %p213 = scmp.lt.s32.totalorder %s12, 9
    %p214 = pnand %p212, %p213
    %p215 = pneg %p214
    // Predicated region
    $region41: #{tpu_custom_call.1} parent=5 // pred_check
      _
    $region42: #{tpu_custom_call.1} parent=5 // pred_check_branch
      %217 = sbr.rel (%p214) target = $region44
    $region43: #{tpu_custom_call.1} parent=5 // pred_region
      %s218 = ssub.s32 %s12, 1
      %s219 = smul.u32 16, %s17
      %p220 = scmp.lt.s32.totalorder %s219, 127
      %s221 = scalar_select %p220, %s219, 127
      %s222 = smul.addr %s221, 8
      %s223 = scalar_lea.vmem %s0, %s222
      %p224 = pneg %p38
      %p225 = pneg %p35
      %p226 = pneg %p59
      %p227 = pneg %p56
      %p228 = pneg %p80
      %p229 = pneg %p77
      %p230 = pneg %p101
      %p231 = pneg %p98
      %p232 = pneg %p122
      %p233 = pneg %p119
      %p234 = pneg %p143
      %p235 = pneg %p140
      %p236 = pneg %p169
      %p237 = pneg %p166
      %s238 = smul.u32 16, %s17
      %p239 = scmp.lt.s32.totalorder %s238, 127
      %s240 = scalar_select %p239, %s238, 127
      %s241 = smul.addr %s240, 8
      %s242 = scalar_lea.vmem %s6, %s241
      %s243 = smul.u32 16, %s17
      %p244 = scmp.lt.s32.totalorder %s243, 127
      %s245 = scalar_select %p244, %s243, 127
      %s246 = smul.addr %s245, 8
      %s247 = scalar_lea.vmem %s0, %s246
      %s248 = smul.u32 16, %s17
      %s249 = smul.u32 16, %s17
      %p250 = scmp.lt.s32.totalorder %s249, 127
      %s251 = scalar_select %p250, %s249, 127
      %s252 = smul.addr %s251, 8
      %s253 = scalar_lea.vmem %s6, %s252
      %s254 = smul.u32 16, %s17
      %v256 = vld [vmem:[%s1] sm:$0x1]
      %v257 = vld [vmem:[%s2] sm:$0xf]
      %v258 = vld [vmem:[%s2 + $0x4] sm:$0xf]
      %v259 = vld [vmem:[%s3] sm:$0x1]
      %v260 = vld [vmem:[%s4] sm:$0xf]
      %v261 = vld [vmem:[%s4 + $0x4] sm:$0xf]
      %v262 = vld [vmem:[%s4 + $0x8] sm:$0xf]
      %v263 = vld [vmem:[%s4 + $0xc] sm:$0xf]
      %v264 = vld [vmem:[%s4 + $0x10] sm:$0xf]
      %v265 = vld [vmem:[%s4 + $0x14] sm:$0xf]
      %v266 = vld [vmem:[%s4 + $0x18] sm:$0xf]
      %v267 = vld [vmem:[%s4 + $0x1c] sm:$0xf]
      %v268 = vld [vmem:[%s4 + $0x20] sm:$0xf]
      %v269 = vld [vmem:[%s4 + $0x24] sm:$0xf]
      %v270 = vld [vmem:[%s4 + $0x28] sm:$0xf]
      %v271 = vld [vmem:[%s4 + $0x2c] sm:$0xf]
      %v272 = vld [vmem:[%s4 + $0x30] sm:$0xf]
      %v273 = vld [vmem:[%s4 + $0x34] sm:$0xf]
      %v274 = vld [vmem:[%s4 + $0x38] sm:$0xf]
      %v275 = vld [vmem:[%s4 + $0x3c] sm:$0xf]
      %v276 = vld [vmem:[%s5] sm:$0x1]
      %v277 = vld [vmem:[%s247] sm:$0xff]
      %v278 = vld [vmem:[%s247 + $0x8] sm:$0xff]
      %v279 = vld [vmem:[%s247 + $0x10] sm:$0xff]
      %v280 = vld [vmem:[%s247 + $0x18] sm:$0xff]
      %v281 = vld [vmem:[%s247 + $0x20] sm:$0xff]
      %v282 = vld [vmem:[%s247 + $0x28] sm:$0xff]
      %v283 = vld [vmem:[%s247 + $0x30] sm:$0xff]
      %v284 = vld [vmem:[%s247 + $0x38] sm:$0xff]
      %v285 = vld [vmem:[%s247 + $0x40] sm:$0xff]
      %v286 = vld [vmem:[%s247 + $0x48] sm:$0xff]
      %v287 = vld [vmem:[%s247 + $0x50] sm:$0xff]
      %v288 = vld [vmem:[%s247 + $0x58] sm:$0xff]
      %v289 = vld [vmem:[%s247 + $0x60] sm:$0xff]
      %v290 = vld [vmem:[%s247 + $0x68] sm:$0xff]
      %v291 = vld [vmem:[%s247 + $0x70] sm:$0xff]
      %v292 = vld [vmem:[%s247 + $0x78] sm:$0xff]
      %v294 = vlaneseq
      %v295 = vshrl.u32 %v294, 7
      %v296 = vsub.s32 0, %v295
      %v297 = vrot.slane %v256, %v296
      %v299 = vmul.f32 %v297, %v277
      %v300 = vmul.f32 %v297, %v278
      %v301 = vmul.f32 %v297, %v279
      %v302 = vmul.f32 %v297, %v280
      %v303 = vmul.f32 %v297, %v281
      %v304 = vmul.f32 %v297, %v282
      %v305 = vmul.f32 %v297, %v283
      %v306 = vmul.f32 %v297, %v284
      %v307 = vmul.f32 %v297, %v285
      %v308 = vmul.f32 %v297, %v286
      %v309 = vmul.f32 %v297, %v287
      %v310 = vmul.f32 %v297, %v288
      %v311 = vmul.f32 %v297, %v289
      %v312 = vmul.f32 %v297, %v290
      %v313 = vmul.f32 %v297, %v291
      %v314 = vmul.f32 %v297, %v292
      %v315 = vand.u32 2147483647, %v277
      %v316 = vand.u32 2147483647, %v278
      %v317 = vand.u32 2147483647, %v279
      %v318 = vand.u32 2147483647, %v280
      %v319 = vand.u32 2147483647, %v281
      %v320 = vand.u32 2147483647, %v282
      %v321 = vand.u32 2147483647, %v283
      %v322 = vand.u32 2147483647, %v284
      %v323 = vand.u32 2147483647, %v285
      %v324 = vand.u32 2147483647, %v286
      %v325 = vand.u32 2147483647, %v287
      %v326 = vand.u32 2147483647, %v288
      %v327 = vand.u32 2147483647, %v289
      %v328 = vand.u32 2147483647, %v290
      %v329 = vand.u32 2147483647, %v291
      %v330 = vand.u32 2147483647, %v292
      %v331 = vpack.c.bf16 %v316, %v315
      %v332 = vpack.c.bf16 %v318, %v317
      %v333 = vpack.c.bf16 %v320, %v319
      %v334 = vpack.c.bf16 %v322, %v321
      %v335 = vpack.c.bf16 %v324, %v323
      %v336 = vpack.c.bf16 %v326, %v325
      %v337 = vpack.c.bf16 %v328, %v327
      %v338 = vpack.c.bf16 %v330, %v329
      %v340 = vlaneseq
      %v341 = vshrl.u32 %v340, 7
      %v342 = vsub.s32 0, %v341
      %v343 = vrot.slane %v259, %v342
      %v347 = vunpack.c.l.b16 %v257
      %v348 = vunpack.c.l.b16 %v258
      %v349 = vpack.c.b16 %v348, %v347
      %vm351 = vcmask 130048
      %v353 = vsel %vm351, %v331, 0
      %v356 = vsel %vm351, %v332, 0
      %v359 = vsel %vm351, %v333, 0
      %v362 = vsel %vm351, %v334, 0
      %v365 = vsel %vm351, %v335, 0
      %v368 = vsel %vm351, %v336, 0
      %v371 = vsel %vm351, %v337, 0
      %v374 = vsel %vm351, %v338, 0
      %376 = vmatprep.subr.bf16.mxu0 0
      %377 = vmatpush1.bf16.msra.mxu0 0
      %378 = vmatprep.subr.bf16.mxu0 0
      %379 = vmatpush1.bf16.msra.mxu0 0
      %380 = vmatprep.subr.bf16.mxu0 0
      %381 = vmatpush1.bf16.msra.mxu0 0
      %382 = vmatprep.subr.bf16.mxu0 0
      %383 = vmatpush1.bf16.msra.mxu0 0
      %384 = vmatprep.subr.bf16.mxu0 0
      %385 = vmatpush1.bf16.msra.mxu0 0
      %386 = vmatprep.subr.bf16.mxu0 0
      %387 = vmatpush1.bf16.msra.mxu0 0
      %388 = vmatprep.subr.bf16.mxu0 0
      %389 = vmatpush1.bf16.msra.mxu0 0
      %390 = vmatprep.subr.bf16.mxu0 0
      %391 = vmatpush1.bf16.msra.mxu0 %v349
      %392 = vmatprep.subr.bf16.mxu0 0
      %393 = vmatpush2.bf16.msra.mxu0 0
      %394 = vmatprep.subr.bf16.mxu0 0
      %395 = vmatpush2.bf16.msra.mxu0 0
      %396 = vmatprep.subr.bf16.mxu0 0
      %397 = vmatpush2.bf16.msra.mxu0 0
      %398 = vmatprep.subr.bf16.mxu0 0
      %399 = vmatpush2.bf16.msra.mxu0 0
      %400 = vmatprep.subr.bf16.mxu0 0
      %401 = vmatpush2.bf16.msra.mxu0 0
      %402 = vmatprep.subr.bf16.mxu0 0
      %403 = vmatpush2.bf16.msra.mxu0 0
      %404 = vmatprep.subr.bf16.mxu0 0
      %405 = vmatpush2.bf16.msra.mxu0 0
      %406 = vmatprep.subr.bf16.mxu0 0
      %407 = vmatpush2.bf16.msra.mxu0 0
      %408 = vmatprep.mubr.bf16.mxu0 0
      %409 = vmatmul.mubr.bf16.gmra.mxu0 %v353
      %v410 = vpop.f32.mrf.mxu0
      %v411 = vadd.f32 %v343, %v410
      %v412 = vpop.f32.mrf.mxu0
      %v413 = vpop.f32.mrf.mxu0
      %v414 = vadd.f32 %v343, %v413
      %v415 = vpop.f32.mrf.mxu0
      %416 = vmatprep.mubr.bf16.mxu0 0
      %417 = vmatmul.mubr.bf16.gmra.mxu0 %v356
      %v418 = vpop.f32.mrf.mxu0
      %v419 = vadd.f32 %v343, %v418
      %v420 = vpop.f32.mrf.mxu0
      %v421 = vpop.f32.mrf.mxu0
      %v422 = vadd.f32 %v343, %v421
      %v423 = vpop.f32.mrf.mxu0
      %424 = vmatprep.mubr.bf16.mxu0 0
      %425 = vmatmul.mubr.bf16.gmra.mxu0 %v359
      %v426 = vpop.f32.mrf.mxu0
      %v427 = vadd.f32 %v343, %v426
      %v428 = vpop.f32.mrf.mxu0
      %v429 = vpop.f32.mrf.mxu0
      %v430 = vadd.f32 %v343, %v429
      %v431 = vpop.f32.mrf.mxu0
      %432 = vmatprep.mubr.bf16.mxu0 0
      %433 = vmatmul.mubr.bf16.gmra.mxu0 %v362
      %v434 = vpop.f32.mrf.mxu0
      %v435 = vadd.f32 %v343, %v434
      %v436 = vpop.f32.mrf.mxu0
      %v437 = vpop.f32.mrf.mxu0
      %v438 = vadd.f32 %v343, %v437
      %v439 = vpop.f32.mrf.mxu0
      %440 = vmatprep.mubr.bf16.mxu0 0
      %441 = vmatmul.mubr.bf16.gmra.mxu0 %v365
      %v442 = vpop.f32.mrf.mxu0
      %v443 = vadd.f32 %v343, %v442
      %v444 = vpop.f32.mrf.mxu0
      %v445 = vpop.f32.mrf.mxu0
      %v446 = vadd.f32 %v343, %v445
      %v447 = vpop.f32.mrf.mxu0
      %448 = vmatprep.mubr.bf16.mxu0 0
      %449 = vmatmul.mubr.bf16.gmra.mxu0 %v368
      %v450 = vpop.f32.mrf.mxu0
      %v451 = vadd.f32 %v343, %v450
      %v452 = vpop.f32.mrf.mxu0
      %v453 = vpop.f32.mrf.mxu0
      %v454 = vadd.f32 %v343, %v453
      %v455 = vpop.f32.mrf.mxu0
      %456 = vmatprep.mubr.bf16.mxu0 0
      %457 = vmatmul.mubr.bf16.gmra.mxu0 %v371
      %v458 = vpop.f32.mrf.mxu0
      %v459 = vadd.f32 %v343, %v458
      %v460 = vpop.f32.mrf.mxu0
      %v461 = vpop.f32.mrf.mxu0
      %v462 = vadd.f32 %v343, %v461
      %v463 = vpop.f32.mrf.mxu0
      %464 = vmatprep.mubr.bf16.mxu0 0
      %465 = vmatmul.mubr.bf16.gmra.mxu0 %v374
      %v466 = vpop.f32.mrf.mxu0
      %v467 = vadd.f32 %v343, %v466
      %v468 = vpop.f32.mrf.mxu0
      %v469 = vpop.f32.mrf.mxu0
      %v470 = vadd.f32 %v343, %v469
      %v471 = vpop.f32.mrf.mxu0
      %472 = vdwg.mxu0
      %v473 = vmax.f32 %v411, 0.0
      %v474 = vmax.f32 %v414, 0.0
      %v475 = vmax.f32 %v419, 0.0
      %v476 = vmax.f32 %v422, 0.0
      %v477 = vmax.f32 %v427, 0.0
      %v478 = vmax.f32 %v430, 0.0
      %v479 = vmax.f32 %v435, 0.0
      %v480 = vmax.f32 %v438, 0.0
      %v481 = vmax.f32 %v443, 0.0
      %v482 = vmax.f32 %v446, 0.0
      %v483 = vmax.f32 %v451, 0.0
      %v484 = vmax.f32 %v454, 0.0
      %v485 = vmax.f32 %v459, 0.0
      %v486 = vmax.f32 %v462, 0.0
      %v487 = vmax.f32 %v467, 0.0
      %v488 = vmax.f32 %v470, 0.0
      %v489 = vpack.c.bf16 %v474, %v473
      %v490 = vpack.c.bf16 %v476, %v475
      %v491 = vpack.c.bf16 %v478, %v477
      %v492 = vpack.c.bf16 %v480, %v479
      %v493 = vpack.c.bf16 %v482, %v481
      %v494 = vpack.c.bf16 %v484, %v483
      %v495 = vpack.c.bf16 %v486, %v485
      %v496 = vpack.c.bf16 %v488, %v487
      %v498 = vlaneseq
      %v499 = vshrl.u32 %v498, 7
      %v500 = vsub.s32 0, %v499
      %v501 = vrot.slane %v276, %v500
      %v519 = vunpack.c.l.b16 %v260
      %v520 = vunpack.c.l.b16 %v261
      %v521 = vunpack.c.l.b16 %v262
      %v522 = vunpack.c.l.b16 %v263
      %v523 = vunpack.c.l.b16 %v264
      %v524 = vunpack.c.l.b16 %v265
      %v525 = vunpack.c.l.b16 %v266
      %v526 = vunpack.c.l.b16 %v267
      %v527 = vunpack.c.l.b16 %v268
      %v528 = vunpack.c.l.b16 %v269
      %v529 = vunpack.c.l.b16 %v270
      %v530 = vunpack.c.l.b16 %v271
      %v531 = vunpack.c.l.b16 %v272
      %v532 = vunpack.c.l.b16 %v273
      %v533 = vunpack.c.l.b16 %v274
      %v534 = vunpack.c.l.b16 %v275
      %v535 = vpack.c.b16 %v520, %v519
      %v536 = vpack.c.b16 %v522, %v521
      %v537 = vpack.c.b16 %v524, %v523
      %v538 = vpack.c.b16 %v526, %v525
      %v539 = vpack.c.b16 %v528, %v527
      %v540 = vpack.c.b16 %v530, %v529
      %v541 = vpack.c.b16 %v532, %v531
      %v542 = vpack.c.b16 %v534, %v533
      %551 = vmatprep.subr.bf16.mxu0 0
      %552 = vmatpush1.bf16.msra.mxu0 %v542
      %553 = vmatprep.subr.bf16.mxu0 0
      %554 = vmatpush1.bf16.msra.mxu0 %v541
      %555 = vmatprep.subr.bf16.mxu0 0
      %556 = vmatpush1.bf16.msra.mxu0 %v540
      %557 = vmatprep.subr.bf16.mxu0 0
      %558 = vmatpush1.bf16.msra.mxu0 %v539
      %559 = vmatprep.subr.bf16.mxu0 0
      %560 = vmatpush1.bf16.msra.mxu0 %v538
      %561 = vmatprep.subr.bf16.mxu0 0
      %562 = vmatpush1.bf16.msra.mxu0 %v537
      %563 = vmatprep.subr.bf16.mxu0 0
      %564 = vmatpush1.bf16.msra.mxu0 %v536
      %565 = vmatprep.subr.bf16.mxu0 0
      %566 = vmatpush1.bf16.msra.mxu0 %v535
      %567 = vmatprep.subr.bf16.mxu0 0
      %568 = vmatpush2.bf16.msra.mxu0 0
      %569 = vmatprep.subr.bf16.mxu0 0
      %570 = vmatpush2.bf16.msra.mxu0 0
      %571 = vmatprep.subr.bf16.mxu0 0
      %572 = vmatpush2.bf16.msra.mxu0 0
      %573 = vmatprep.subr.bf16.mxu0 0
      %574 = vmatpush2.bf16.msra.mxu0 0
      %575 = vmatprep.subr.bf16.mxu0 0
      %576 = vmatpush2.bf16.msra.mxu0 0
      %577 = vmatprep.subr.bf16.mxu0 0
      %578 = vmatpush2.bf16.msra.mxu0 0
      %579 = vmatprep.subr.bf16.mxu0 0
      %580 = vmatpush2.bf16.msra.mxu0 0
      %581 = vmatprep.subr.bf16.mxu0 0
      %582 = vmatpush2.bf16.msra.mxu0 0
      %583 = vmatprep.mubr.bf16.mxu0 0
      %584 = vmatmul.mubr.bf16.gmra.mxu0 %v489
      %v585 = vpop.f32.mrf.mxu0
      %v586 = vadd.f32 %v501, %v585
      %v587 = vpop.f32.mrf.mxu0
      %v588 = vpop.f32.mrf.mxu0
      %v589 = vadd.f32 %v501, %v588
      %v590 = vpop.f32.mrf.mxu0
      %591 = vmatprep.mubr.bf16.mxu0 0
      %592 = vmatmul.mubr.bf16.gmra.mxu0 %v490
      %v593 = vpop.f32.mrf.mxu0
      %v594 = vadd.f32 %v501, %v593
      %v595 = vpop.f32.mrf.mxu0
      %v596 = vpop.f32.mrf.mxu0
      %v597 = vadd.f32 %v501, %v596
      %v598 = vpop.f32.mrf.mxu0
      %599 = vmatprep.mubr.bf16.mxu0 0
      %600 = vmatmul.mubr.bf16.gmra.mxu0 %v491
      %v601 = vpop.f32.mrf.mxu0
      %v602 = vadd.f32 %v501, %v601
      %v603 = vpop.f32.mrf.mxu0
      %v604 = vpop.f32.mrf.mxu0
      %v605 = vadd.f32 %v501, %v604
      %v606 = vpop.f32.mrf.mxu0
      %607 = vmatprep.mubr.bf16.mxu0 0
      %608 = vmatmul.mubr.bf16.gmra.mxu0 %v492
      %v609 = vpop.f32.mrf.mxu0
      %v610 = vadd.f32 %v501, %v609
      %v611 = vpop.f32.mrf.mxu0
      %v612 = vpop.f32.mrf.mxu0
      %v613 = vadd.f32 %v501, %v612
      %v614 = vpop.f32.mrf.mxu0
      %615 = vmatprep.mubr.bf16.mxu0 0
      %616 = vmatmul.mubr.bf16.gmra.mxu0 %v493
      %v617 = vpop.f32.mrf.mxu0
      %v618 = vadd.f32 %v501, %v617
      %v619 = vpop.f32.mrf.mxu0
      %v620 = vpop.f32.mrf.mxu0
      %v621 = vadd.f32 %v501, %v620
      %v622 = vpop.f32.mrf.mxu0
      %623 = vmatprep.mubr.bf16.mxu0 0
      %624 = vmatmul.mubr.bf16.gmra.mxu0 %v494
      %v625 = vpop.f32.mrf.mxu0
      %v626 = vadd.f32 %v501, %v625
      %v627 = vpop.f32.mrf.mxu0
      %v628 = vpop.f32.mrf.mxu0
      %v629 = vadd.f32 %v501, %v628
      %v630 = vpop.f32.mrf.mxu0
      %631 = vmatprep.mubr.bf16.mxu0 0
      %632 = vmatmul.mubr.bf16.gmra.mxu0 %v495
      %v633 = vpop.f32.mrf.mxu0
      %v634 = vadd.f32 %v501, %v633
      %v635 = vpop.f32.mrf.mxu0
      %v636 = vpop.f32.mrf.mxu0
      %v637 = vadd.f32 %v501, %v636
      %v638 = vpop.f32.mrf.mxu0
      %639 = vmatprep.mubr.bf16.mxu0 0
      %640 = vmatmul.mubr.bf16.gmra.mxu0 %v496
      %v641 = vpop.f32.mrf.mxu0
      %v642 = vadd.f32 %v501, %v641
      %v643 = vpop.f32.mrf.mxu0
      %v644 = vpop.f32.mrf.mxu0
      %v645 = vadd.f32 %v501, %v644
      %v646 = vpop.f32.mrf.mxu0
      %647 = vdwg.mxu0
      %v648 = vmul.f32 %v586, 0.5
      %v649 = vmul.f32 %v589, 0.5
      %v650 = vmul.f32 %v594, 0.5
      %v651 = vmul.f32 %v597, 0.5
      %v652 = vmul.f32 %v602, 0.5
      %v653 = vmul.f32 %v605, 0.5
      %v654 = vmul.f32 %v610, 0.5
      %v655 = vmul.f32 %v613, 0.5
      %v656 = vmul.f32 %v618, 0.5
      %v657 = vmul.f32 %v621, 0.5
      %v658 = vmul.f32 %v626, 0.5
      %v659 = vmul.f32 %v629, 0.5
      %v660 = vmul.f32 %v634, 0.5
      %v661 = vmul.f32 %v637, 0.5
      %v662 = vmul.f32 %v642, 0.5
      %v663 = vmul.f32 %v645, 0.5
      %v664 = vtanh.pop %v648
      %v665 = vtanh.pop %v649
      %v666 = vtanh.pop %v650
      %v667 = vtanh.pop %v651
      %v668 = vtanh.pop %v652
      %v669 = vtanh.pop %v653
      %v670 = vtanh.pop %v654
      %v671 = vtanh.pop %v655
      %v672 = vtanh.pop %v656
      %v673 = vtanh.pop %v657
      %v674 = vtanh.pop %v658
      %v675 = vtanh.pop %v659
      %v676 = vtanh.pop %v660
      %v677 = vtanh.pop %v661
      %v678 = vtanh.pop %v662
      %v679 = vtanh.pop %v663
      %v680 = vadd.f32 %v664, 1.0
      %v681 = vadd.f32 %v665, 1.0
      %v682 = vadd.f32 %v666, 1.0
      %v683 = vadd.f32 %v667, 1.0
      %v684 = vadd.f32 %v668, 1.0
      %v685 = vadd.f32 %v669, 1.0
      %v686 = vadd.f32 %v670, 1.0
      %v687 = vadd.f32 %v671, 1.0
      %v688 = vadd.f32 %v672, 1.0
      %v689 = vadd.f32 %v673, 1.0
      %v690 = vadd.f32 %v674, 1.0
      %v691 = vadd.f32 %v675, 1.0
      %v692 = vadd.f32 %v676, 1.0
      %v693 = vadd.f32 %v677, 1.0
      %v694 = vadd.f32 %v678, 1.0
      %v695 = vadd.f32 %v679, 1.0
      %v696 = vmul.f32 %v680, 0.5
      %v697 = vmul.f32 %v681, 0.5
      %v698 = vmul.f32 %v682, 0.5
      %v699 = vmul.f32 %v683, 0.5
      %v700 = vmul.f32 %v684, 0.5
      %v701 = vmul.f32 %v685, 0.5
      %v702 = vmul.f32 %v686, 0.5
      %v703 = vmul.f32 %v687, 0.5
      %v704 = vmul.f32 %v688, 0.5
      %v705 = vmul.f32 %v689, 0.5
      %v706 = vmul.f32 %v690, 0.5
      %v707 = vmul.f32 %v691, 0.5
      %v708 = vmul.f32 %v692, 0.5
      %v709 = vmul.f32 %v693, 0.5
      %v710 = vmul.f32 %v694, 0.5
      %v711 = vmul.f32 %v695, 0.5
      %v712 = vmul.f32 %v299, %v696
      %v713 = vmul.f32 %v300, %v697
      %v714 = vmul.f32 %v301, %v698
      %v715 = vmul.f32 %v302, %v699
      %v716 = vmul.f32 %v303, %v700
      %v717 = vmul.f32 %v304, %v701
      %v718 = vmul.f32 %v305, %v702
      %v719 = vmul.f32 %v306, %v703
      %v720 = vmul.f32 %v307, %v704
      %v721 = vmul.f32 %v308, %v705
      %v722 = vmul.f32 %v309, %v706
      %v723 = vmul.f32 %v310, %v707
      %v724 = vmul.f32 %v311, %v708
      %v725 = vmul.f32 %v312, %v709
      %v726 = vmul.f32 %v313, %v710
      %v727 = vmul.f32 %v314, %v711
      %v728 = vadd.f32 %v712, %v277
      %v729 = vadd.f32 %v713, %v278
      %v730 = vadd.f32 %v714, %v279
      %v731 = vadd.f32 %v715, %v280
      %v732 = vadd.f32 %v716, %v281
      %v733 = vadd.f32 %v717, %v282
      %v734 = vadd.f32 %v718, %v283
      %v735 = vadd.f32 %v719, %v284
      %v736 = vadd.f32 %v720, %v285
      %v737 = vadd.f32 %v721, %v286
      %v738 = vadd.f32 %v722, %v287
      %v739 = vadd.f32 %v723, %v288
      %v740 = vadd.f32 %v724, %v289
      %v741 = vadd.f32 %v725, %v290
      %v742 = vadd.f32 %v726, %v291
      %v743 = vadd.f32 %v727, %v292
      %744 = vst.msk [vmem:[%s253] sm:$0xff] %vm351, %v728
      %745 = vst.msk [vmem:[%s253 + $0x8] sm:$0xff] %vm351, %v729
      %746 = vst.msk [vmem:[%s253 + $0x10] sm:$0xff] %vm351, %v730
      %747 = vst.msk [vmem:[%s253 + $0x18] sm:$0xff] %vm351, %v731
      %748 = vst.msk [vmem:[%s253 + $0x20] sm:$0xff] %vm351, %v732
      %749 = vst.msk [vmem:[%s253 + $0x28] sm:$0xff] %vm351, %v733
      %750 = vst.msk [vmem:[%s253 + $0x30] sm:$0xff] %vm351, %v734
      %751 = vst.msk [vmem:[%s253 + $0x38] sm:$0xff] %vm351, %v735
      %752 = vst.msk [vmem:[%s253 + $0x40] sm:$0xff] %vm351, %v736
      %753 = vst.msk [vmem:[%s253 + $0x48] sm:$0xff] %vm351, %v737
      %754 = vst.msk [vmem:[%s253 + $0x50] sm:$0xff] %vm351, %v738
      %755 = vst.msk [vmem:[%s253 + $0x58] sm:$0xff] %vm351, %v739
      %756 = vst.msk [vmem:[%s253 + $0x60] sm:$0xff] %vm351, %v740
      %757 = vst.msk [vmem:[%s253 + $0x68] sm:$0xff] %vm351, %v741
      %758 = vst.msk [vmem:[%s253 + $0x70] sm:$0xff] %vm351, %v742
      %759 = vst.msk [vmem:[%s253 + $0x78] sm:$0xff] %vm351, %v743
      %s760 = smul.u32 16, %s17
      %p761 = scmp.lt.s32.totalorder %s760, 127
      %s762 = scalar_select %p761, %s760, 127
      %s763 = smul.addr %s762, 8
      %s764 = scalar_lea.vmem %s6, %s763
      // Predicated region
      $region45: #{tpu_custom_call.1} parent=43 // pred_check
        %p765 = pneg %p166
      $region46: #{tpu_custom_call.1} parent=43 // pred_check_branch
        %767 = sbr.rel (%p765) target = $region48
      $region47: #{tpu_custom_call.1} parent=43 // pred_region
        %s768 = smul.u32 16, %s17
      $region48: #{tpu_custom_call.1} parent=43 // pred_fallthru
        _
    $region44: #{tpu_custom_call.1} parent=5 // pred_fallthru
      _
    %p769 = scmp.le.s32.totalorder 2, %s12
    // Predicated region
    $region49: #{tpu_custom_call.1} parent=5 // pred_check
      %p770 = pneg %p769
    $region50: #{tpu_custom_call.1} parent=5 // pred_check_branch
      %772 = sbr.rel (%p770) target = $region52
    $region51: #{tpu_custom_call.1} parent=5 // pred_region
      %s773 = ssub.s32 %s12, 2
      // Predicated region
      $region53: #{tpu_custom_call.1} parent=51 // pred_check
        %p774 = pneg %p172
      $region54: #{tpu_custom_call.1} parent=51 // pred_check_branch
        %776 = sbr.rel (%p774) target = $region56
      $region55: #{tpu_custom_call.1} parent=51 // pred_region
        %s777 = smul.u32 16, %s18
        %p778 = scmp.lt.s32.totalorder %s777, 127
        %s779 = scalar_select %p778, %s777, 127
        %s780 = smul.addr %s779, 8
        %s781 = scalar_lea.vmem %s6, %s780
      $region56: #{tpu_custom_call.1} parent=51 // pred_fallthru
        _
    $region52: #{tpu_custom_call.1} parent=5 // pred_fallthru
      _
  $region6: #{tpu_custom_call.1} parent=0 // loop_footer
    %s16 = sadd.s32 1, %s12
  $region7: #{tpu_custom_call.1} parent=0 // loop_footer_branch
    %11 = sbr.rel target = $region3
  $region8: #{tpu_custom_call.1} parent=0 // loop_exit
    _

</llo_original>
